<compile_context>
chip_gen: v7x
topology: tpu7x:2x2x1
jax: 0.10.0
libtpu: 0.0.40
codegen_flags: <defaults>
</compile_context>

<pallas_src>
import jax
import jax.numpy as jnp
from jax.experimental import pallas as pl
from jax.experimental.pallas import tpu as pltpu


def _round_up(n: int, m: int) -> int:
    return ((n + m - 1) // m) * m


def _mlp_kernel(x_ref, w1_ref, b1_ref, w2_ref, b2_ref, o_ref):
    # Grid: (batch tiles [parallel], hidden tiles [arbitrary/reduction]).
    @pl.when(pl.program_id(1) == 0)
    def _init():
        # Initialize the resident f32 output block with the output-layer bias.
        o_ref[...] = jnp.broadcast_to(b2_ref[...], o_ref.shape)

    # Hidden layer on the MXU (f32 accumulate); bias + ReLU in f32 on the VPU.
    h = jnp.dot(x_ref[...], w1_ref[...], preferred_element_type=jnp.float32)
    h = jnp.maximum(h + b1_ref[...], 0.0)
    # Output layer: accumulate this hidden-slice contribution into the output
    # block, which stays VMEM-resident across the hidden grid axis.
    o_ref[...] += jnp.dot(h.astype(w2_ref.dtype), w2_ref[...],
                          preferred_element_type=jnp.float32)


def _select_tiling(B, In, H, out_p, cbytes, sub, budget, block_b):
    """Pick (batch tile tb, hidden tile tH, #hidden tiles n_h).

    Prefers fully VMEM-resident (single-buffered) weights; falls back to
    streaming the hidden dimension when the weights do not fit.
    """

    def vmem_est(tb, tH, resident):
        wbuf = 1 if resident else 2                 # single vs double-buffered weights
        x_b = 2 * tb * In * cbytes                  # streamed input tile
        o_b = 2 * tb * out_p * 4                    # f32 output tile
        w_b = wbuf * (In * tH + tH * out_p) * cbytes
        bias_b = wbuf * (tH + out_p) * 4
        h_b = tb * tH * (4 + cbytes)                # f32 hidden + compute-dtype copy
        return x_b + o_b + w_b + bias_b + h_b

    if B <= sub:
        # Tiny batch: a single block equal to the full (unpadded) batch.
        return B, H, 1

    if B >= 2 * 256:
        gran = 256                                  # MXU M-dim cadence on v6e/v7x
        # Keep >= 2 batch tiles so both v7x TensorCores get work.
        tb = min(block_b, _round_up(pl.cdiv(B, 2), gran))
        tb = max(gran, (tb // gran) * gran)
    else:
        gran = sub
        tb = max(sub, (min(block_b, B) // sub) * sub)

    # 1) Fully-resident weights; shrink the batch tile in `gran` steps (no
    #    halving, so we don't strand VMEM budget).
    t = tb
    while t > gran and vmem_est(t, H, True) > budget:
        t -= gran
    if vmem_est(t, H, True) <= budget:
        return t, H, 1

    # 2) Weights too large for VMEM: tile the hidden dim and stream the weights.
    for tH in (2048, 1024, 512, 256):
        if tH >= H:
            continue
        t = tb
        while t > gran and vmem_est(t, tH, False) > budget:
            t -= gran
        if vmem_est(t, tH, False) <= budget:
            return t, tH, pl.cdiv(H, tH)

    # TODO(synk): also tile the In (contraction) dim for extreme In/Out sizes.
    return gran, 256, pl.cdiv(H, 256)


def mlp_forward(x, w1, b1, w2, b2, *, block_b: int = 512, use_bf16: bool = True):
    """Fused MLP forward: relu(x @ w1 + b1) @ w2 + b2.

    Args:
      x:  (B, In)   any float dtype.
      w1: (In, H)   (transpose of PyTorch's (H, In) weight)
      b1: (H,)
      w2: (H, Out)  (transpose of PyTorch's (Out, H) weight)
      b2: (Out,)
    Returns:
      (B, Out) float32 logits.
    """
    B, In = x.shape
    In_w, H = w1.shape
    H2, Out = w2.shape
    assert In == In_w and H == H2

    compute_dtype = jnp.bfloat16 if use_bf16 else jnp.float32
    cbytes = jnp.dtype(compute_dtype).itemsize
    sub = 16 if use_bf16 else 8  # native sublane tile for the compute dtype

    # Output lane handling: pad to a 128 multiple only when it is large and
    # misaligned; for small Out the masked store beats 16x write amplification.
    if Out <= 128 or Out % 128 == 0:
        out_p = Out
    else:
        out_p = _round_up(Out, 128)

    # Device-derived VMEM budget (128 MiB on v5e/v6e, 64 MiB per TC on v7x).
    try:
        vmem_cap = int(pltpu.get_tpu_info().vmem_capacity_bytes)
    except Exception:
        vmem_cap = 64 * 1024 * 1024  # conservative fallback (v7x-sized)
    vmem_budget = int(vmem_cap * 0.65)   # tiling headroom for compiler scratch
    vmem_limit = int(vmem_cap * 0.85)    # scoped VMEM limit for Mosaic

    tb, tH, n_h = _select_tiling(B, In, H, out_p, cbytes, sub, vmem_budget, block_b)
    n_b = pl.cdiv(B, tb)
    H_p = n_h * tH
    resident = (n_h == 1)

    # Cast (no batch padding: ragged last block is handled by Pallas).
    # NOTE: with use_bf16=True the MXU inputs are bf16 (f32 accumulation),
    # an intentional precision trade-off vs. the PyTorch f32 Linear.
    x_c = x.astype(compute_dtype)
    if H_p == H:
        w1_c = w1.astype(compute_dtype)
        b1_c = b1.reshape(1, H).astype(jnp.float32)
    else:
        w1_c = jnp.zeros((In, H_p), compute_dtype).at[:, :H].set(x.dtype.type(0) * 0 + w1.astype(compute_dtype))
        b1_c = jnp.zeros((1, H_p), jnp.float32).at[:, :H].set(b1.astype(jnp.float32).reshape(1, H))
    if H_p == H and out_p == Out:
        w2_c = w2.astype(compute_dtype)
        b2_c = b2.reshape(1, Out).astype(jnp.float32)
    else:
        w2_c = jnp.zeros((H_p, out_p), compute_dtype).at[:H, :Out].set(w2.astype(compute_dtype))
        b2_c = jnp.zeros((1, out_p), jnp.float32).at[:, :Out].set(b2.astype(jnp.float32).reshape(1, Out))

    cost = pl.CostEstimate(
        flops=2 * B * (In * H + H * Out),
        transcendentals=0,
        bytes_accessed=int(B * In * cbytes + (In * H_p + H_p * out_p) * cbytes
                           + (H_p + out_p) * 4 + B * out_p * 4),
    )

    def run(single_buffer_weights):
        def pspec(shape, idx):
            if single_buffer_weights:
                # Grid-constant params: one VMEM buffer is enough.
                return pl.BlockSpec(shape, idx, pipeline_mode=pl.Buffered(1))
            return pl.BlockSpec(shape, idx)

        grid_spec = pltpu.PrefetchScalarGridSpec(
            num_scalar_prefetch=0,
            grid=(n_b, n_h),
            in_specs=[
                pl.BlockSpec((tb, In), lambda i, j: (i, 0)),   # streamed x tile
                pspec((In, tH), lambda i, j: (0, j)),          # w1 (resident or streamed)
                pspec((1, tH), lambda i, j: (0, j)),           # b1
                pspec((tH, out_p), lambda i, j: (j, 0)),       # w2
                pspec((1, out_p), lambda i, j: (0, 0)),        # b2 (always constant)
            ],
            out_specs=pl.BlockSpec((tb, out_p), lambda i, j: (i, 0)),
        )
        return pl.pallas_call(
            _mlp_kernel,
            out_shape=jax.ShapeDtypeStruct((B, out_p), jnp.float32),
            grid_spec=grid_spec,
            compiler_params=pltpu.CompilerParams(
                dimension_semantics=("parallel", "arbitrary"),
                vmem_limit_bytes=vmem_limit,
            ),
            cost_estimate=cost,
        )(x_c, w1_c, b1_c, w2_c, b2_c)

    if resident:
        try:
            out = run(True)
        except Exception:
            # pl.Buffered(1) not supported on this build: default double buffering.
            out = run(False)
    else:
        out = run(False)

    if out_p != Out:
        out = out[:, :Out]
    return out


if __name__ == "__main__":
    # Module config: MLP(input_size=16, hidden_size=32, output_size=8)
    batch, input_size, hidden_size, output_size = 2, 16, 32, 8

    key = jax.random.PRNGKey(0)
    kx, kw1, kb1, kw2, kb2 = jax.random.split(key, 5)

    x = jax.random.normal(kx, (batch, input_size), dtype=jnp.float32)

    # Deterministic parameter init (PyTorch-Linear-like uniform bounds).
    bound1 = 1.0 / (input_size ** 0.5)
    w1 = jax.random.uniform(kw1, (input_size, hidden_size), jnp.float32,
                            -bound1, bound1)
    b1 = jax.random.uniform(kb1, (hidden_size,), jnp.float32, -bound1, bound1)
    bound2 = 1.0 / (hidden_size ** 0.5)
    w2 = jax.random.uniform(kw2, (hidden_size, output_size), jnp.float32,
                            -bound2, bound2)
    b2 = jax.random.uniform(kb2, (output_size,), jnp.float32, -bound2, bound2)

    # Pure-JAX reference.
    ref = jnp.maximum(x @ w1 + b1, 0.0) @ w2 + b2

    # f32 path: exact-semantics check (tight tolerance).
    out_f32 = mlp_forward(x, w1, b1, w2, b2, use_bf16=False)
    jax.block_until_ready(out_f32)
    assert out_f32.shape == (batch, output_size)
    assert jnp.allclose(out_f32, ref, atol=1e-5, rtol=1e-5)

    # bf16-MXU path (default): f32 accumulation, looser tolerance for bf16 inputs.
    out_bf16 = mlp_forward(x, w1, b1, w2, b2, use_bf16=True)
    jax.block_until_ready(out_bf16)
    assert out_bf16.shape == (batch, output_size)
    assert jnp.allclose(out_bf16, ref, atol=3e-2, rtol=3e-2)

    print("KERNEL_OK")
</pallas_src>

<mosaic_0001>
module attributes {stable_mosaic.version = 11 : i64} {
  func.func @_mlp_kernel(%arg0: i32, %arg1: i32, %arg2: memref<2x16xf32, #tpu.memory_space<vmem>>, %arg3: memref<16x32xf32, #tpu.memory_space<vmem>>, %arg4: memref<1x32xf32, #tpu.memory_space<vmem>>, %arg5: memref<32x8xf32, #tpu.memory_space<vmem>>, %arg6: memref<1x8xf32, #tpu.memory_space<vmem>>, %arg7: memref<2x8xf32, #tpu.memory_space<vmem>>) attributes {dimension_semantics = [#tpu.dimension_semantics<parallel>, #tpu.dimension_semantics<arbitrary>], iteration_bounds = array<i64: 1, 1>, scalar_prefetch = 0 : i64, scratch_operands = 0 : i64, tpu.core_type = #tpu.core_type<tc>, window_params = [{transform_indices = @transform_0, window_bounds = array<i64: 2, 16>}, {pipeline_mode = #tpu.pipeline_mode<synchronous>, transform_indices = @transform_1, window_bounds = array<i64: 16, 32>}, {pipeline_mode = #tpu.pipeline_mode<synchronous>, transform_indices = @transform_2, window_bounds = array<i64: 1, 32>}, {pipeline_mode = #tpu.pipeline_mode<synchronous>, transform_indices = @transform_3, window_bounds = array<i64: 32, 8>}, {pipeline_mode = #tpu.pipeline_mode<synchronous>, transform_indices = @transform_4, window_bounds = array<i64: 1, 8>}, {transform_indices = @transform_5, window_bounds = array<i64: 2, 8>}]} {
    %c0_i32 = arith.constant 0 : i32
    %0 = arith.cmpi eq, %arg1, %c0_i32 : i32
    %1 = arith.extui %0 : i1 to i32
    %c0_i32_0 = arith.constant 0 : i32
    %2 = arith.cmpi ne, %1, %c0_i32_0 : i32
    scf.if %2 {
      %c0_14 = arith.constant 0 : index
      %c0_15 = arith.constant 0 : index
      %16 = vector.load %arg6[%c0_14, %c0_15] : memref<1x8xf32, #tpu.memory_space<vmem>>, vector<1x8xf32>
      %17 = vector.shape_cast %16 : vector<1x8xf32> to vector<1x8xf32>
      %18 = vector.broadcast %17 : vector<1x8xf32> to vector<2x8xf32>
      %c0_16 = arith.constant 0 : index
      %c0_17 = arith.constant 0 : index
      %19 = vector.load %arg7[%c0_16, %c0_17] : memref<2x8xf32, #tpu.memory_space<vmem>>, vector<2x8xf32>
      tpu.vector_store %arg7[%c0_16, %c0_17], %18 {strides = array<i32>} : memref<2x8xf32, #tpu.memory_space<vmem>>, vector<2x8xf32>,
    } else {
    }
    %c0 = arith.constant 0 : index
    %c0_1 = arith.constant 0 : index
    %3 = vector.load %arg2[%c0, %c0_1] : memref<2x16xf32, #tpu.memory_space<vmem>>, vector<2x16xf32>
    %c0_2 = arith.constant 0 : index
    %c0_3 = arith.constant 0 : index
    %4 = vector.load %arg3[%c0_2, %c0_3] : memref<16x32xf32, #tpu.memory_space<vmem>>, vector<16x32xf32>
    %cst = arith.constant dense<0.000000e+00> : vector<2x32xf32>
    %5 = tpu.matmul %3, %4, %cst {dimension_numbers = #tpu.dot_dimension_numbers<[1], [0], [0], [1], [0, 0, 1, 1], [], []>} : vector<2x16xf32>, vector<16x32xf32>, vector<2x32xf32> -> vector<2x32xf32>
    %c0_4 = arith.constant 0 : index
    %c0_5 = arith.constant 0 : index
    %6 = vector.load %arg4[%c0_4, %c0_5] : memref<1x32xf32, #tpu.memory_space<vmem>>, vector<1x32xf32>
    %7 = vector.broadcast %6 : vector<1x32xf32> to vector<2x32xf32>
    %8 = arith.addf %5, %7 : vector<2x32xf32>
    %cst_6 = arith.constant 0.000000e+00 : f32
    %9 = vector.broadcast %cst_6 : f32 to vector<2x32xf32>
    %10 = arith.maximumf %8, %9 : vector<2x32xf32>
    %c0_7 = arith.constant 0 : index
    %c0_8 = arith.constant 0 : index
    %11 = vector.load %arg7[%c0_7, %c0_8] : memref<2x8xf32, #tpu.memory_space<vmem>>, vector<2x8xf32>
    %c0_9 = arith.constant 0 : index
    %c0_10 = arith.constant 0 : index
    %12 = vector.load %arg5[%c0_9, %c0_10] : memref<32x8xf32, #tpu.memory_space<vmem>>, vector<32x8xf32>
    %cst_11 = arith.constant dense<0.000000e+00> : vector<2x8xf32>
    %13 = tpu.matmul %10, %12, %cst_11 {dimension_numbers = #tpu.dot_dimension_numbers<[1], [0], [0], [1], [0, 0, 1, 1], [], []>} : vector<2x32xf32>, vector<32x8xf32>, vector<2x8xf32> -> vector<2x8xf32>
    %14 = arith.addf %11, %13 : vector<2x8xf32>
    %c0_12 = arith.constant 0 : index
    %c0_13 = arith.constant 0 : index
    %15 = vector.load %arg7[%c0_12, %c0_13] : memref<2x8xf32, #tpu.memory_space<vmem>>, vector<2x8xf32>
    tpu.vector_store %arg7[%c0_12, %c0_13], %14 {strides = array<i32>} : memref<2x8xf32, #tpu.memory_space<vmem>>, vector<2x8xf32>,
    return
  }
  func.func @transform_0(%arg0: i32, %arg1: i32) -> (i32, i32) {
    %c0_i32 = arith.constant 0 : i32
    %c0_i32_0 = arith.constant 0 : i32
    return %arg0, %c0_i32 : i32, i32
  }
  func.func @transform_1(%arg0: i32, %arg1: i32) -> (i32, i32) {
    %c0_i32 = arith.constant 0 : i32
    %c0_i32_0 = arith.constant 0 : i32
    return %c0_i32, %arg1 : i32, i32
  }
  func.func @transform_2(%arg0: i32, %arg1: i32) -> (i32, i32) {
    %c0_i32 = arith.constant 0 : i32
    %c0_i32_0 = arith.constant 0 : i32
    return %c0_i32, %arg1 : i32, i32
  }
  func.func @transform_3(%arg0: i32, %arg1: i32) -> (i32, i32) {
    %c0_i32 = arith.constant 0 : i32
    %c0_i32_0 = arith.constant 0 : i32
    return %arg1, %c0_i32 : i32, i32
  }
  func.func @transform_4(%arg0: i32, %arg1: i32) -> (i32, i32) {
    %c0_i32 = arith.constant 0 : i32
    %c0_i32_0 = arith.constant 0 : i32
    %c0_i32_1 = arith.constant 0 : i32
    return %c0_i32, %c0_i32_0 : i32, i32
  }
  func.func @transform_5(%arg0: i32, %arg1: i32) -> (i32, i32) {
    %c0_i32 = arith.constant 0 : i32
    %c0_i32_0 = arith.constant 0 : i32
    return %arg0, %c0_i32 : i32, i32
  }
}

module attributes {stable_mosaic.version = 11 : i64} {
  func.func @_mlp_kernel(%arg0: i32, %arg1: i32, %arg2: memref<2x16xf32, #tpu.memory_space<vmem>>, %arg3: memref<16x32xf32, #tpu.memory_space<vmem>>, %arg4: memref<1x32xf32, #tpu.memory_space<vmem>>, %arg5: memref<32x8xf32, #tpu.memory_space<vmem>>, %arg6: memref<1x8xf32, #tpu.memory_space<vmem>>, %arg7: memref<2x8xf32, #tpu.memory_space<vmem>>) attributes {dimension_semantics = [#tpu.dimension_semantics<parallel>, #tpu.dimension_semantics<arbitrary>], iteration_bounds = array<i64: 1, 1>, scalar_prefetch = 0 : i64, scratch_operands = 0 : i64, tpu.core_type = #tpu.core_type<tc>, window_params = [{transform_indices = @transform_0, window_bounds = array<i64: 2, 16>}, {transform_indices = @transform_1, window_bounds = array<i64: 16, 32>}, {transform_indices = @transform_2, window_bounds = array<i64: 1, 32>}, {transform_indices = @transform_3, window_bounds = array<i64: 32, 8>}, {pipeline_mode = #tpu.pipeline_mode<synchronous>, transform_indices = @transform_4, window_bounds = array<i64: 1, 8>}, {transform_indices = @transform_5, window_bounds = array<i64: 2, 8>}]} {
    %c0_i32 = arith.constant 0 : i32
    %0 = arith.cmpi eq, %arg1, %c0_i32 : i32
    %1 = arith.extui %0 : i1 to i32
    %c0_i32_0 = arith.constant 0 : i32
    %2 = arith.cmpi ne, %1, %c0_i32_0 : i32
    scf.if %2 {
      %c0_14 = arith.constant 0 : index
      %c0_15 = arith.constant 0 : index
      %16 = vector.load %arg6[%c0_14, %c0_15] : memref<1x8xf32, #tpu.memory_space<vmem>>, vector<1x8xf32>
      %17 = vector.shape_cast %16 : vector<1x8xf32> to vector<1x8xf32>
      %18 = vector.broadcast %17 : vector<1x8xf32> to vector<2x8xf32>
      %c0_16 = arith.constant 0 : index
      %c0_17 = arith.constant 0 : index
      %19 = vector.load %arg7[%c0_16, %c0_17] : memref<2x8xf32, #tpu.memory_space<vmem>>, vector<2x8xf32>
      tpu.vector_store %arg7[%c0_16, %c0_17], %18 {strides = array<i32>} : memref<2x8xf32, #tpu.memory_space<vmem>>, vector<2x8xf32>,
    } else {
    }
    %c0 = arith.constant 0 : index
    %c0_1 = arith.constant 0 : index
    %3 = vector.load %arg2[%c0, %c0_1] : memref<2x16xf32, #tpu.memory_space<vmem>>, vector<2x16xf32>
    %c0_2 = arith.constant 0 : index
    %c0_3 = arith.constant 0 : index
    %4 = vector.load %arg3[%c0_2, %c0_3] : memref<16x32xf32, #tpu.memory_space<vmem>>, vector<16x32xf32>
    %cst = arith.constant dense<0.000000e+00> : vector<2x32xf32>
    %5 = tpu.matmul %3, %4, %cst {dimension_numbers = #tpu.dot_dimension_numbers<[1], [0], [0], [1], [0, 0, 1, 1], [], []>} : vector<2x16xf32>, vector<16x32xf32>, vector<2x32xf32> -> vector<2x32xf32>
    %c0_4 = arith.constant 0 : index
    %c0_5 = arith.constant 0 : index
    %6 = vector.load %arg4[%c0_4, %c0_5] : memref<1x32xf32, #tpu.memory_space<vmem>>, vector<1x32xf32>
    %7 = vector.broadcast %6 : vector<1x32xf32> to vector<2x32xf32>
    %8 = arith.addf %5, %7 : vector<2x32xf32>
    %cst_6 = arith.constant 0.000000e+00 : f32
    %9 = vector.broadcast %cst_6 : f32 to vector<2x32xf32>
    %10 = arith.maximumf %8, %9 : vector<2x32xf32>
    %c0_7 = arith.constant 0 : index
    %c0_8 = arith.constant 0 : index
    %11 = vector.load %arg7[%c0_7, %c0_8] : memref<2x8xf32, #tpu.memory_space<vmem>>, vector<2x8xf32>
    %c0_9 = arith.constant 0 : index
    %c0_10 = arith.constant 0 : index
    %12 = vector.load %arg5[%c0_9, %c0_10] : memref<32x8xf32, #tpu.memory_space<vmem>>, vector<32x8xf32>
    %cst_11 = arith.constant dense<0.000000e+00> : vector<2x8xf32>
    %13 = tpu.matmul %10, %12, %cst_11 {dimension_numbers = #tpu.dot_dimension_numbers<[1], [0], [0], [1], [0, 0, 1, 1], [], []>} : vector<2x32xf32>, vector<32x8xf32>, vector<2x8xf32> -> vector<2x8xf32>
    %14 = arith.addf %11, %13 : vector<2x8xf32>
    %c0_12 = arith.constant 0 : index
    %c0_13 = arith.constant 0 : index
    %15 = vector.load %arg7[%c0_12, %c0_13] : memref<2x8xf32, #tpu.memory_space<vmem>>, vector<2x8xf32>
    tpu.vector_store %arg7[%c0_12, %c0_13], %14 {strides = array<i32>} : memref<2x8xf32, #tpu.memory_space<vmem>>, vector<2x8xf32>,
    return
  }
  func.func @transform_0(%arg0: i32, %arg1: i32) -> (i32, i32) {
    %c0_i32 = arith.constant 0 : i32
    %c0_i32_0 = arith.constant 0 : i32
    return %arg0, %c0_i32 : i32, i32
  }
  func.func @transform_1(%arg0: i32, %arg1: i32) -> (i32, i32) {
    %c0_i32 = arith.constant 0 : i32
    %c0_i32_0 = arith.constant 0 : i32
    return %c0_i32, %arg1 : i32, i32
  }
  func.func @transform_2(%arg0: i32, %arg1: i32) -> (i32, i32) {
    %c0_i32 = arith.constant 0 : i32
    %c0_i32_0 = arith.constant 0 : i32
    return %c0_i32, %arg1 : i32, i32
  }
  func.func @transform_3(%arg0: i32, %arg1: i32) -> (i32, i32) {
    %c0_i32 = arith.constant 0 : i32
    %c0_i32_0 = arith.constant 0 : i32
    return %arg1, %c0_i32 : i32, i32
  }
  func.func @transform_4(%arg0: i32, %arg1: i32) -> (i32, i32) {
    %c0_i32 = arith.constant 0 : i32
    %c0_i32_0 = arith.constant 0 : i32
    %c0_i32_1 = arith.constant 0 : i32
    return %c0_i32, %c0_i32_0 : i32, i32
  }
  func.func @transform_5(%arg0: i32, %arg1: i32) -> (i32, i32) {
    %c0_i32 = arith.constant 0 : i32
    %c0_i32_0 = arith.constant 0 : i32
    return %arg0, %c0_i32 : i32, i32
  }
}

</mosaic_0001>

<llo_original>
// kernel: tpu_custom_call.1
$region0: #{tpu_custom_call.1}
  #allocation0 [shape = 'u32[]', space=smem, size = 0x4, offset = 0x4, fixed_abs, tag = 'smem constant byte address 0x4 - core index']
  #allocation1 [shape = 'u32[144,128]{1,0:T(1,128)}', space=vmem, size = 0x12000, scoped, tag = 'internal scratch']
  %s0 = inlined_call_operand.vmem [shape: f32[2,16], index: 0, kind: input, shape index: {}]
  %s1 = inlined_call_operand.vmem [shape: f32[16,32], index: 1, kind: input, shape index: {}]
  %s2 = inlined_call_operand.vmem [shape: f32[1,32], index: 2, kind: input, shape index: {}]
  %s3 = inlined_call_operand.vmem [shape: f32[32,8], index: 3, kind: input, shape index: {}]
  %s4 = inlined_call_operand.vmem [shape: f32[1,8], index: 4, kind: input, shape index: {}]
  %s5 = inlined_call_operand.hbm [shape: f32[2,8], index: 5, kind: output, shape index: {}]
  %s6 = sld [smem:[#allocation0]]
  $region34: #{tpu_custom_call.1} parent=0
    _
  %s8 = ssub.s32 1, %s6
  %s9 = scalar_select 0, %s8, %s6
  $region1: #{tpu_custom_call.1} parent=0
    #allocation2 [shape = 'u8[1024]{0}', space=vmem, size = 0x400, scoped, tag = 'output window, operand 0, single buffered']
    #allocation3 [shape = 's32[1]{0}', space=sflag, size = 0x4, scoped, tag = 'scoped memory for tpu_custom_call.1']
    %10 = vsyncpa [#allocation3], 0
    // Predicated region
    $region2: #{tpu_custom_call.1} parent=1 // pred_check
      _
    $region3: #{tpu_custom_call.1} parent=1 // pred_check_branch
      %12 = sbr.rel (0) target = $region5
    $region4: #{tpu_custom_call.1} parent=1 // pred_region
      _
    $region5: #{tpu_custom_call.1} parent=1 // pred_fallthru
      _
    // Predicated region
    $region6: #{tpu_custom_call.1} parent=1 // pred_check
      _
    $region7: #{tpu_custom_call.1} parent=1 // pred_check_branch
      %14 = sbr.rel (0) target = $region9
    $region8: #{tpu_custom_call.1} parent=1 // pred_region
      _
    $region9: #{tpu_custom_call.1} parent=1 // pred_fallthru
      _
    // Predicated region
    $region10: #{tpu_custom_call.1} parent=1 // pred_check
      _
    $region11: #{tpu_custom_call.1} parent=1 // pred_check_branch
      %16 = sbr.rel (0) target = $region13
    $region12: #{tpu_custom_call.1} parent=1 // pred_region
      _
    $region13: #{tpu_custom_call.1} parent=1 // pred_fallthru
      _
    // Predicated region
    $region14: #{tpu_custom_call.1} parent=1 // pred_check
      _
    $region15: #{tpu_custom_call.1} parent=1 // pred_check_branch
      %18 = sbr.rel (0) target = $region17
    $region16: #{tpu_custom_call.1} parent=1 // pred_region
      _
    $region17: #{tpu_custom_call.1} parent=1 // pred_fallthru
      _
    // Predicated region
    $region18: #{tpu_custom_call.1} parent=1 // pred_check
      _
    $region19: #{tpu_custom_call.1} parent=1 // pred_check_branch
      %20 = sbr.rel (0) target = $region21
    $region20: #{tpu_custom_call.1} parent=1 // pred_region
      _
    $region21: #{tpu_custom_call.1} parent=1 // pred_fallthru
      _
    %p21 = scmp.eq.s32.totalorder 0, 0
    // Predicated region
    $region22: #{tpu_custom_call.1} parent=1 // pred_check
      %p22 = pneg %p21
    $region23: #{tpu_custom_call.1} parent=1 // pred_check_branch
      %24 = sbr.rel (%p22) target = $region25
    $region24: #{tpu_custom_call.1} parent=1 // pred_region
      %v25 = vld [vmem:[%s4] sm:$0x1]
      %v27 = vlaneseq
      %v28 = vshrl.u32 %v27, 7
      %v29 = vsub.s32 0, %v28
      %v30 = vrot.slane %v25, %v29
      %vm32 = vcmask 58368
      %33 = vst.msk [vmem:[#allocation2] sm:$0x3] %vm32, %v30
    $region25: #{tpu_custom_call.1} parent=1 // pred_fallthru
      _
    %v34 = vld [vmem:[%s0] sm:$0x3]
    %v35 = vld [vmem:[%s1] sm:$0xff]
    %v36 = vld [vmem:[%s1 + $0x8] sm:$0xff]
    %v37 = vld [vmem:[%s2] sm:$0x1]
    %v39 = vlaneseq
    %v40 = vshrl.u32 %v39, 7
    %v41 = vsub.s32 0, %v40
    %v42 = vrot.slane %v37, %v41
    %vm44 = vcmask 130048
    %v46 = vsel %vm44, %v34, 0
    %48 = vmatprep.subr.mxu0 0.0
    %49 = vmatpush1.msra.mxu0 %v35
    %50 = vmatprep.subr.mxu0 0.0
    %51 = vmatpush1.msra.mxu0 %v36
    %52 = vmatprep.subr.mxu0 0.0
    %53 = vmatpush1.msra.mxu0 0.0
    %54 = vmatprep.subr.mxu0 0.0
    %55 = vmatpush1.msra.mxu0 0.0
    %56 = vmatprep.subr.mxu0 0.0
    %57 = vmatpush1.msra.mxu0 0.0
    %58 = vmatprep.subr.mxu0 0.0
    %59 = vmatpush1.msra.mxu0 0.0
    %60 = vmatprep.subr.mxu0 0.0
    %61 = vmatpush1.msra.mxu0 0.0
    %62 = vmatprep.subr.mxu0 0.0
    %63 = vmatpush1.msra.mxu0 0.0
    %64 = vmatprep.subr.mxu0 0.0
    %65 = vmatpush1.msra.mxu0 0.0
    %66 = vmatprep.subr.mxu0 0.0
    %67 = vmatpush1.msra.mxu0 0.0
    %68 = vmatprep.subr.mxu0 0.0
    %69 = vmatpush1.msra.mxu0 0.0
    %70 = vmatprep.subr.mxu0 0.0
    %71 = vmatpush1.msra.mxu0 0.0
    %72 = vmatprep.subr.mxu0 0.0
    %73 = vmatpush1.msra.mxu0 0.0
    %74 = vmatprep.subr.mxu0 0.0
    %75 = vmatpush1.msra.mxu0 0.0
    %76 = vmatprep.subr.mxu0 0.0
    %77 = vmatpush1.msra.mxu0 0.0
    %78 = vmatprep.subr.mxu0 0.0
    %79 = vmatpush1.msra.mxu0 0.0
    %80 = vmatprep.subr.mxu0 0.0
    %81 = vmatpush1.msra.mxu0 0.0
    %82 = vmatprep.subr.mxu0 0.0
    %83 = vmatpush1.msra.mxu0 0.0
    %84 = vmatprep.subr.mxu0 0.0
    %85 = vmatpush1.msra.mxu0 0.0
    %86 = vmatprep.subr.mxu0 0.0
    %87 = vmatpush1.msra.mxu0 0.0
    %88 = vmatprep.subr.mxu0 0.0
    %89 = vmatpush1.msra.mxu0 0.0
    %90 = vmatprep.subr.mxu0 0.0
    %91 = vmatpush1.msra.mxu0 0.0
    %92 = vmatprep.subr.mxu0 0.0
    %93 = vmatpush1.msra.mxu0 0.0
    %94 = vmatprep.subr.mxu0 0.0
    %95 = vmatpush1.msra.mxu0 0.0
    %96 = vmatprep.subr.mxu0 0.0
    %97 = vmatpush1.msra.mxu0 0.0
    %98 = vmatprep.subr.mxu0 0.0
    %99 = vmatpush1.msra.mxu0 0.0
    %100 = vmatprep.subr.mxu0 0.0
    %101 = vmatpush1.msra.mxu0 0.0
    %102 = vmatprep.subr.mxu0 0.0
    %103 = vmatpush1.msra.mxu0 0.0
    %104 = vmatprep.subr.mxu0 0.0
    %105 = vmatpush1.msra.mxu0 0.0
    %106 = vmatprep.subr.mxu0 0.0
    %107 = vmatpush1.msra.mxu0 0.0
    %108 = vmatprep.subr.mxu0 0.0
    %109 = vmatpush1.msra.mxu0 0.0
    %110 = vmatprep.subr.mxu0 0.0
    %111 = vmatpush1.msra.mxu0 0.0
    %112 = vmatprep.mubr.f32.mxu0 0.0
    %113 = vmatmul.mubr.f32.gmra.mrb[0].mxu0 %v46
    %v114 = vpop.f32.mrb[0].mxu0
    %v115 = vadd.f32 %v42, %v114
    %v116 = vpop.f32.mrb[0].mxu0
    %117 = vdwg.mxu0
    %v118 = vmax.f32 %v115, 0.0
    %v119 = vld [vmem:[#allocation2] sm:$0x3]
    %v120 = vld [vmem:[%s3] sm:$0xff]
    %v121 = vld [vmem:[%s3 + $0x8] sm:$0xff]
    %v122 = vld [vmem:[%s3 + $0x10] sm:$0xff]
    %v123 = vld [vmem:[%s3 + $0x18] sm:$0xff]
    %vm124 = vcmask 261120
    %v126 = vsel %vm124, %v118, 0
    %128 = vmatprep.subr.mxu0 0.0
    %129 = vmatpush1.msra.mxu0 %v120
    %130 = vmatprep.subr.mxu0 0.0
    %131 = vmatpush1.msra.mxu0 %v121
    %132 = vmatprep.subr.mxu0 0.0
    %133 = vmatpush1.msra.mxu0 %v122
    %134 = vmatprep.subr.mxu0 0.0
    %135 = vmatpush1.msra.mxu0 %v123
    %136 = vmatprep.subr.mxu0 0.0
    %137 = vmatpush1.msra.mxu0 0.0
    %138 = vmatprep.subr.mxu0 0.0
    %139 = vmatpush1.msra.mxu0 0.0
    %140 = vmatprep.subr.mxu0 0.0
    %141 = vmatpush1.msra.mxu0 0.0
    %142 = vmatprep.subr.mxu0 0.0
    %143 = vmatpush1.msra.mxu0 0.0
    %144 = vmatprep.subr.mxu0 0.0
    %145 = vmatpush1.msra.mxu0 0.0
    %146 = vmatprep.subr.mxu0 0.0
    %147 = vmatpush1.msra.mxu0 0.0
    %148 = vmatprep.subr.mxu0 0.0
    %149 = vmatpush1.msra.mxu0 0.0
    %150 = vmatprep.subr.mxu0 0.0
    %151 = vmatpush1.msra.mxu0 0.0
    %152 = vmatprep.subr.mxu0 0.0
    %153 = vmatpush1.msra.mxu0 0.0
    %154 = vmatprep.subr.mxu0 0.0
    %155 = vmatpush1.msra.mxu0 0.0
    %156 = vmatprep.subr.mxu0 0.0
    %157 = vmatpush1.msra.mxu0 0.0
    %158 = vmatprep.subr.mxu0 0.0
    %159 = vmatpush1.msra.mxu0 0.0
    %160 = vmatprep.subr.mxu0 0.0
    %161 = vmatpush1.msra.mxu0 0.0
    %162 = vmatprep.subr.mxu0 0.0
    %163 = vmatpush1.msra.mxu0 0.0
    %164 = vmatprep.subr.mxu0 0.0
    %165 = vmatpush1.msra.mxu0 0.0
    %166 = vmatprep.subr.mxu0 0.0
    %167 = vmatpush1.msra.mxu0 0.0
    %168 = vmatprep.subr.mxu0 0.0
    %169 = vmatpush1.msra.mxu0 0.0
    %170 = vmatprep.subr.mxu0 0.0
    %171 = vmatpush1.msra.mxu0 0.0
    %172 = vmatprep.subr.mxu0 0.0
    %173 = vmatpush1.msra.mxu0 0.0
    %174 = vmatprep.subr.mxu0 0.0
    %175 = vmatpush1.msra.mxu0 0.0
    %176 = vmatprep.subr.mxu0 0.0
    %177 = vmatpush1.msra.mxu0 0.0
    %178 = vmatprep.subr.mxu0 0.0
    %179 = vmatpush1.msra.mxu0 0.0
    %180 = vmatprep.subr.mxu0 0.0
    %181 = vmatpush1.msra.mxu0 0.0
    %182 = vmatprep.subr.mxu0 0.0
    %183 = vmatpush1.msra.mxu0 0.0
    %184 = vmatprep.subr.mxu0 0.0
    %185 = vmatpush1.msra.mxu0 0.0
    %186 = vmatprep.subr.mxu0 0.0
    %187 = vmatpush1.msra.mxu0 0.0
    %188 = vmatprep.subr.mxu0 0.0
    %189 = vmatpush1.msra.mxu0 0.0
    %190 = vmatprep.subr.mxu0 0.0
    %191 = vmatpush1.msra.mxu0 0.0
    %192 = vmatprep.mubr.f32.mxu0 0.0
    %193 = vmatmul.mubr.f32.gmra.mrb[0].mxu0 %v126
    %v194 = vpop.f32.mrb[0].mxu0
    %v195 = vadd.f32 0.0, %v194
    %v196 = vpop.f32.mrb[0].mxu0
    %197 = vdwg.mxu0
    %v198 = vadd.f32 %v119, %v195
    %vm199 = vcmask 58368
    %200 = vst.msk [vmem:[#allocation2] sm:$0x3] %vm199, %v198
    // Predicated region
    $region26: #{tpu_custom_call.1} parent=1 // pred_check
      _
    $region27: #{tpu_custom_call.1} parent=1 // pred_check_branch
      %202 = sbr.rel (0) target = $region29
    $region28: #{tpu_custom_call.1} parent=1 // pred_region
      %s204 = ssub.s32 32, 32
      %205 = vsyncadd [#allocation3], %s204
      %s207 = sshll.u32 [#allocation2], 4
      %s208 = int_to_ptr.vmem [resolvable:$true] %s207
      %210 = dma.vmem_to_hbm [thread:$0]  %s208, 32, %s5, [#allocation3]
    $region29: #{tpu_custom_call.1} parent=1 // pred_fallthru
      _
    // Predicated region
    $region30: #{tpu_custom_call.1} parent=1 // pred_check
      _
    $region31: #{tpu_custom_call.1} parent=1 // pred_check_branch
      %212 = sbr.rel (0) target = $region33
    $region32: #{tpu_custom_call.1} parent=1 // pred_region
      %213 = dma.done [#allocation3], 32
    $region33: #{tpu_custom_call.1} parent=1 // pred_fallthru
      _
    %214 = vsyncpa [#allocation3], 1

// kernel: tpu_custom_call.1
$region0: #{tpu_custom_call.1}
  #allocation0 [shape = 'u32[]', space=smem, size = 0x4, offset = 0x4, fixed_abs, tag = 'smem constant byte address 0x4 - core index']
  #allocation1 [shape = 'u32[144,128]{1,0:T(1,128)}', space=vmem, size = 0x12000, scoped, tag = 'internal scratch']
  %s0 = inlined_call_operand.vmem [shape: f32[2,16], index: 0, kind: input, shape index: {}]
  %s1 = inlined_call_operand.vmem [shape: f32[16,32], index: 1, kind: input, shape index: {}]
  %s2 = inlined_call_operand.vmem [shape: f32[1,32], index: 2, kind: input, shape index: {}]
  %s3 = inlined_call_operand.vmem [shape: f32[32,8], index: 3, kind: input, shape index: {}]
  %s4 = inlined_call_operand.vmem [shape: f32[1,8], index: 4, kind: input, shape index: {}]
  %s5 = inlined_call_operand.hbm [shape: f32[2,8], index: 5, kind: output, shape index: {}]
  %s6 = sld [smem:[#allocation0]]
  $region34: #{tpu_custom_call.1} parent=0
    _
  %s8 = ssub.s32 1, %s6
  %s9 = scalar_select 0, %s8, %s6
  $region1: #{tpu_custom_call.1} parent=0
    #allocation2 [shape = 'u8[1024]{0}', space=vmem, size = 0x400, scoped, tag = 'output window, operand 0, single buffered']
    #allocation3 [shape = 's32[1]{0}', space=sflag, size = 0x4, scoped, tag = 'scoped memory for tpu_custom_call.1']
    %10 = vsyncpa [#allocation3], 0
    // Predicated region
    $region2: #{tpu_custom_call.1} parent=1 // pred_check
      _
    $region3: #{tpu_custom_call.1} parent=1 // pred_check_branch
      %12 = sbr.rel (0) target = $region5
    $region4: #{tpu_custom_call.1} parent=1 // pred_region
      _
    $region5: #{tpu_custom_call.1} parent=1 // pred_fallthru
      _
    // Predicated region
    $region6: #{tpu_custom_call.1} parent=1 // pred_check
      _
    $region7: #{tpu_custom_call.1} parent=1 // pred_check_branch
      %14 = sbr.rel (0) target = $region9
    $region8: #{tpu_custom_call.1} parent=1 // pred_region
      _
    $region9: #{tpu_custom_call.1} parent=1 // pred_fallthru
      _
    // Predicated region
    $region10: #{tpu_custom_call.1} parent=1 // pred_check
      _
    $region11: #{tpu_custom_call.1} parent=1 // pred_check_branch
      %16 = sbr.rel (0) target = $region13
    $region12: #{tpu_custom_call.1} parent=1 // pred_region
      _
    $region13: #{tpu_custom_call.1} parent=1 // pred_fallthru
      _
    // Predicated region
    $region14: #{tpu_custom_call.1} parent=1 // pred_check
      _
    $region15: #{tpu_custom_call.1} parent=1 // pred_check_branch
      %18 = sbr.rel (0) target = $region17
    $region16: #{tpu_custom_call.1} parent=1 // pred_region
      _
    $region17: #{tpu_custom_call.1} parent=1 // pred_fallthru
      _
    // Predicated region
    $region18: #{tpu_custom_call.1} parent=1 // pred_check
      _
    $region19: #{tpu_custom_call.1} parent=1 // pred_check_branch
      %20 = sbr.rel (0) target = $region21
    $region20: #{tpu_custom_call.1} parent=1 // pred_region
      _
    $region21: #{tpu_custom_call.1} parent=1 // pred_fallthru
      _
    %p21 = scmp.eq.s32.totalorder 0, 0
    // Predicated region
    $region22: #{tpu_custom_call.1} parent=1 // pred_check
      %p22 = pneg %p21
    $region23: #{tpu_custom_call.1} parent=1 // pred_check_branch
      %24 = sbr.rel (%p22) target = $region25
    $region24: #{tpu_custom_call.1} parent=1 // pred_region
      %v25 = vld [vmem:[%s4] sm:$0x1]
      %v27 = vlaneseq
      %v28 = vshrl.u32 %v27, 7
      %v29 = vsub.s32 0, %v28
      %v30 = vrot.slane %v25, %v29
      %vm32 = vcmask 58368
      %33 = vst.msk [vmem:[#allocation2] sm:$0x3] %vm32, %v30
    $region25: #{tpu_custom_call.1} parent=1 // pred_fallthru
      _
    %v34 = vld [vmem:[%s0] sm:$0x3]
    %v35 = vld [vmem:[%s1] sm:$0xff]
    %v36 = vld [vmem:[%s1 + $0x8] sm:$0xff]
    %v37 = vld [vmem:[%s2] sm:$0x1]
    %v39 = vlaneseq
    %v40 = vshrl.u32 %v39, 7
    %v41 = vsub.s32 0, %v40
    %v42 = vrot.slane %v37, %v41
    %vm44 = vcmask 130048
    %v46 = vsel %vm44, %v34, 0
    %48 = vmatprep.subr.mxu0 0.0
    %49 = vmatpush1.msra.mxu0 %v35
    %50 = vmatprep.subr.mxu0 0.0
    %51 = vmatpush1.msra.mxu0 %v36
    %52 = vmatprep.subr.mxu0 0.0
    %53 = vmatpush1.msra.mxu0 0.0
    %54 = vmatprep.subr.mxu0 0.0
    %55 = vmatpush1.msra.mxu0 0.0
    %56 = vmatprep.subr.mxu0 0.0
    %57 = vmatpush1.msra.mxu0 0.0
    %58 = vmatprep.subr.mxu0 0.0
    %59 = vmatpush1.msra.mxu0 0.0
    %60 = vmatprep.subr.mxu0 0.0
    %61 = vmatpush1.msra.mxu0 0.0
    %62 = vmatprep.subr.mxu0 0.0
    %63 = vmatpush1.msra.mxu0 0.0
    %64 = vmatprep.subr.mxu0 0.0
    %65 = vmatpush1.msra.mxu0 0.0
    %66 = vmatprep.subr.mxu0 0.0
    %67 = vmatpush1.msra.mxu0 0.0
    %68 = vmatprep.subr.mxu0 0.0
    %69 = vmatpush1.msra.mxu0 0.0
    %70 = vmatprep.subr.mxu0 0.0
    %71 = vmatpush1.msra.mxu0 0.0
    %72 = vmatprep.subr.mxu0 0.0
    %73 = vmatpush1.msra.mxu0 0.0
    %74 = vmatprep.subr.mxu0 0.0
    %75 = vmatpush1.msra.mxu0 0.0
    %76 = vmatprep.subr.mxu0 0.0
    %77 = vmatpush1.msra.mxu0 0.0
    %78 = vmatprep.subr.mxu0 0.0
    %79 = vmatpush1.msra.mxu0 0.0
    %80 = vmatprep.subr.mxu0 0.0
    %81 = vmatpush1.msra.mxu0 0.0
    %82 = vmatprep.subr.mxu0 0.0
    %83 = vmatpush1.msra.mxu0 0.0
    %84 = vmatprep.subr.mxu0 0.0
    %85 = vmatpush1.msra.mxu0 0.0
    %86 = vmatprep.subr.mxu0 0.0
    %87 = vmatpush1.msra.mxu0 0.0
    %88 = vmatprep.subr.mxu0 0.0
    %89 = vmatpush1.msra.mxu0 0.0
    %90 = vmatprep.subr.mxu0 0.0
    %91 = vmatpush1.msra.mxu0 0.0
    %92 = vmatprep.subr.mxu0 0.0
    %93 = vmatpush1.msra.mxu0 0.0
    %94 = vmatprep.subr.mxu0 0.0
    %95 = vmatpush1.msra.mxu0 0.0
    %96 = vmatprep.subr.mxu0 0.0
    %97 = vmatpush1.msra.mxu0 0.0
    %98 = vmatprep.subr.mxu0 0.0
    %99 = vmatpush1.msra.mxu0 0.0
    %100 = vmatprep.subr.mxu0 0.0
    %101 = vmatpush1.msra.mxu0 0.0
    %102 = vmatprep.subr.mxu0 0.0
    %103 = vmatpush1.msra.mxu0 0.0
    %104 = vmatprep.subr.mxu0 0.0
    %105 = vmatpush1.msra.mxu0 0.0
    %106 = vmatprep.subr.mxu0 0.0
    %107 = vmatpush1.msra.mxu0 0.0
    %108 = vmatprep.subr.mxu0 0.0
    %109 = vmatpush1.msra.mxu0 0.0
    %110 = vmatprep.subr.mxu0 0.0
    %111 = vmatpush1.msra.mxu0 0.0
    %112 = vmatprep.mubr.f32.mxu0 0.0
    %113 = vmatmul.mubr.f32.gmra.mrb[0].mxu0 %v46
    %v114 = vpop.f32.mrb[0].mxu0
    %v115 = vadd.f32 %v42, %v114
    %v116 = vpop.f32.mrb[0].mxu0
    %117 = vdwg.mxu0
    %v118 = vmax.f32 %v115, 0.0
    %v119 = vld [vmem:[#allocation2] sm:$0x3]
    %v120 = vld [vmem:[%s3] sm:$0xff]
    %v121 = vld [vmem:[%s3 + $0x8] sm:$0xff]
    %v122 = vld [vmem:[%s3 + $0x10] sm:$0xff]
    %v123 = vld [vmem:[%s3 + $0x18] sm:$0xff]
    %vm124 = vcmask 261120
    %v126 = vsel %vm124, %v118, 0
    %128 = vmatprep.subr.mxu0 0.0
    %129 = vmatpush1.msra.mxu0 %v120
    %130 = vmatprep.subr.mxu0 0.0
    %131 = vmatpush1.msra.mxu0 %v121
    %132 = vmatprep.subr.mxu0 0.0
    %133 = vmatpush1.msra.mxu0 %v122
    %134 = vmatprep.subr.mxu0 0.0
    %135 = vmatpush1.msra.mxu0 %v123
    %136 = vmatprep.subr.mxu0 0.0
    %137 = vmatpush1.msra.mxu0 0.0
    %138 = vmatprep.subr.mxu0 0.0
    %139 = vmatpush1.msra.mxu0 0.0
    %140 = vmatprep.subr.mxu0 0.0
    %141 = vmatpush1.msra.mxu0 0.0
    %142 = vmatprep.subr.mxu0 0.0
    %143 = vmatpush1.msra.mxu0 0.0
    %144 = vmatprep.subr.mxu0 0.0
    %145 = vmatpush1.msra.mxu0 0.0
    %146 = vmatprep.subr.mxu0 0.0
    %147 = vmatpush1.msra.mxu0 0.0
    %148 = vmatprep.subr.mxu0 0.0
    %149 = vmatpush1.msra.mxu0 0.0
    %150 = vmatprep.subr.mxu0 0.0
    %151 = vmatpush1.msra.mxu0 0.0
    %152 = vmatprep.subr.mxu0 0.0
    %153 = vmatpush1.msra.mxu0 0.0
    %154 = vmatprep.subr.mxu0 0.0
    %155 = vmatpush1.msra.mxu0 0.0
    %156 = vmatprep.subr.mxu0 0.0
    %157 = vmatpush1.msra.mxu0 0.0
    %158 = vmatprep.subr.mxu0 0.0
    %159 = vmatpush1.msra.mxu0 0.0
    %160 = vmatprep.subr.mxu0 0.0
    %161 = vmatpush1.msra.mxu0 0.0
    %162 = vmatprep.subr.mxu0 0.0
    %163 = vmatpush1.msra.mxu0 0.0
    %164 = vmatprep.subr.mxu0 0.0
    %165 = vmatpush1.msra.mxu0 0.0
    %166 = vmatprep.subr.mxu0 0.0
    %167 = vmatpush1.msra.mxu0 0.0
    %168 = vmatprep.subr.mxu0 0.0
    %169 = vmatpush1.msra.mxu0 0.0
    %170 = vmatprep.subr.mxu0 0.0
    %171 = vmatpush1.msra.mxu0 0.0
    %172 = vmatprep.subr.mxu0 0.0
    %173 = vmatpush1.msra.mxu0 0.0
    %174 = vmatprep.subr.mxu0 0.0
    %175 = vmatpush1.msra.mxu0 0.0
    %176 = vmatprep.subr.mxu0 0.0
    %177 = vmatpush1.msra.mxu0 0.0
    %178 = vmatprep.subr.mxu0 0.0
    %179 = vmatpush1.msra.mxu0 0.0
    %180 = vmatprep.subr.mxu0 0.0
    %181 = vmatpush1.msra.mxu0 0.0
    %182 = vmatprep.subr.mxu0 0.0
    %183 = vmatpush1.msra.mxu0 0.0
    %184 = vmatprep.subr.mxu0 0.0
    %185 = vmatpush1.msra.mxu0 0.0
    %186 = vmatprep.subr.mxu0 0.0
    %187 = vmatpush1.msra.mxu0 0.0
    %188 = vmatprep.subr.mxu0 0.0
    %189 = vmatpush1.msra.mxu0 0.0
    %190 = vmatprep.subr.mxu0 0.0
    %191 = vmatpush1.msra.mxu0 0.0
    %192 = vmatprep.mubr.f32.mxu0 0.0
    %193 = vmatmul.mubr.f32.gmra.mrb[0].mxu0 %v126
    %v194 = vpop.f32.mrb[0].mxu0
    %v195 = vadd.f32 0.0, %v194
    %v196 = vpop.f32.mrb[0].mxu0
    %197 = vdwg.mxu0
    %v198 = vadd.f32 %v119, %v195
    %vm199 = vcmask 58368
    %200 = vst.msk [vmem:[#allocation2] sm:$0x3] %vm199, %v198
    // Predicated region
    $region26: #{tpu_custom_call.1} parent=1 // pred_check
      _
    $region27: #{tpu_custom_call.1} parent=1 // pred_check_branch
      %202 = sbr.rel (0) target = $region29
    $region28: #{tpu_custom_call.1} parent=1 // pred_region
      %s204 = ssub.s32 32, 32
      %205 = vsyncadd [#allocation3], %s204
      %s207 = sshll.u32 [#allocation2], 4
      %s208 = int_to_ptr.vmem [resolvable:$true] %s207
      %210 = dma.vmem_to_hbm [thread:$0]  %s208, 32, %s5, [#allocation3]
    $region29: #{tpu_custom_call.1} parent=1 // pred_fallthru
      _
    // Predicated region
    $region30: #{tpu_custom_call.1} parent=1 // pred_check
      _
    $region31: #{tpu_custom_call.1} parent=1 // pred_check_branch
      %212 = sbr.rel (0) target = $region33
    $region32: #{tpu_custom_call.1} parent=1 // pred_region
      %213 = dma.done [#allocation3], 32
    $region33: #{tpu_custom_call.1} parent=1 // pred_fallthru
      _
    %214 = vsyncpa [#allocation3], 1

</llo_original>
